<compile_context>
chip_gen: v7x
topology: tpu7x:2x2x1
jax: 0.10.0
libtpu: 0.0.40
codegen_flags: <defaults>
</compile_context>

<pallas_src>
import functools

import jax
import jax.numpy as jnp
from jax.experimental import pallas as pl
from jax.experimental.pallas import tpu as pltpu

EPS = 1e-5  # torch.nn.LayerNorm default


# ---------------------------------------------------------------------------
# Kernels
# ---------------------------------------------------------------------------
def _adaln_cond_kernel(x_ref, s_ref, gamma_ref, w_fused_ref, b_scale_ref,
                       o_ref, *, mm_dtype):
    """Adaptive LayerNorm with single-cond modulation.

    x_ref       : (TR, c_x)         tile of x rows
    s_ref       : (TR, c_cond)      tile of single_cond rows
    gamma_ref   : (1, c_cond)       single_cond_layer_norm weight (f32)
    w_fused_ref : (c_cond, 2*c_x)   [W_scale; W_bias]^T, pre-transposed in the
                                    wrapper so the kernel does a plain s_n @ W
    b_scale_ref : (1, c_x)          single_cond_scale bias (f32)
    o_ref       : (TR, c_x)
    """
    c_x = o_ref.shape[-1]

    x = x_ref[...].astype(jnp.float32)
    s = s_ref[...].astype(jnp.float32)

    # LayerNorm(x): elementwise_affine=False, bias=False.  Two-pass stats in
    # f32 (matches torch numerics).
    mu_x = jnp.mean(x, axis=-1, keepdims=True)
    xc = x - mu_x
    var_x = jnp.mean(xc * xc, axis=-1, keepdims=True)
    x_n = xc * jax.lax.rsqrt(var_x + EPS)

    # LayerNorm(single_cond): weight, no bias.
    mu_s = jnp.mean(s, axis=-1, keepdims=True)
    sc = s - mu_s
    var_s = jnp.mean(sc * sc, axis=-1, keepdims=True)
    s_n = sc * jax.lax.rsqrt(var_s + EPS) * gamma_ref[...].astype(jnp.float32)

    # One fused MXU matmul: (TR, c_cond) @ (c_cond, 2*c_x) -> (TR, 2*c_x),
    # K x N weight layout with the lane-dense output dim last.
    proj = jnp.dot(s_n.astype(mm_dtype), w_fused_ref[...],
                   preferred_element_type=jnp.float32)

    scale = proj[:, :c_x] + b_scale_ref[...].astype(jnp.float32)
    bias = proj[:, c_x:]

    # sigmoid(z) = 0.5*tanh(0.5*z) + 0.5 : a single EUP push per element.
    gate = 0.5 * jnp.tanh(0.5 * scale) + 0.5
    o_ref[...] = (gate * x_n + bias).astype(o_ref.dtype)


def _plain_ln_kernel(x_ref, w_ref, b_ref, o_ref):
    """Plain LayerNorm(c_x) with weight + bias (use_single_cond=False path)."""
    x = x_ref[...].astype(jnp.float32)
    mu = jnp.mean(x, axis=-1, keepdims=True)
    xc = x - mu
    var = jnp.mean(xc * xc, axis=-1, keepdims=True)
    x_n = xc * jax.lax.rsqrt(var + EPS)
    o_ref[...] = (x_n * w_ref[...].astype(jnp.float32)
                  + b_ref[...].astype(jnp.float32)).astype(o_ref.dtype)


# ---------------------------------------------------------------------------
# Wrapper
# ---------------------------------------------------------------------------
def _round_up(a, m):
    return ((a + m - 1) // m) * m


def _sublane_multiple(dtype):
    # f32 -> 8 rows per vreg, bf16 -> 16, int8/fp8 -> 32.
    return {4: 8, 2: 16, 1: 32}.get(jnp.dtype(dtype).itemsize, 8)


def _vmem_budgets():
    """(double-buffered working-set budget, vmem_limit_bytes) per generation."""
    cap = 64 * 1024 * 1024  # conservative default == v7x per-TC VMEM
    try:
        info = pltpu.get_tpu_info()
        cap = int(getattr(info, "vmem_capacity_bytes", cap))
    except Exception:
        pass
    if cap <= 64 * 1024 * 1024:
        # v7x-class: 64 MiB physical per TensorCore -> leave headroom.
        return 40 * 1024 * 1024, 48 * 1024 * 1024
    # v5e / v6e: 128 MiB physical (scoped default is only 16/32 MiB, so the
    # explicit limit is essential to keep large tiles double-buffered).
    return 88 * 1024 * 1024, 100 * 1024 * 1024


def adaptive_layer_norm(x, single_cond, params, *, use_single_cond,
                        row_tile=None, matmul_dtype=jnp.float32):
    """x: [..., N, c_x]; single_cond: [..., N, c_single_cond] or None.

    Leading dims are flattened into rows; the feature axis maps to TPU lanes.
    Rows are tiled `row_tile` at a time; a cdiv grid handles ragged row counts
    (no wrapper-side padding / slicing, so no extra HBM passes).
    """
    orig_shape = x.shape
    c_x = orig_shape[-1]
    x2 = x.reshape(-1, c_x)
    R = x2.shape[0]

    in_isize = jnp.dtype(x2.dtype).itemsize
    out_isize = in_isize
    sub = _sublane_multiple(x2.dtype)
    ws_budget, vmem_limit = _vmem_budgets()

    if use_single_cond:
        assert single_cond is not None
        c_cond = single_cond.shape[-1]
        s_isize = jnp.dtype(single_cond.dtype).itemsize
        row_bytes = c_x * in_isize + c_cond * s_isize + c_x * out_isize
    else:
        row_bytes = c_x * (in_isize + out_isize)

    if row_tile is None:
        # ~16 MiB of HBM traffic per grid step (per-step overhead < ~2%), but
        # never more than half the double-buffered VMEM budget.
        target = min(16 * 1024 * 1024, ws_budget // 2)
        rt = max(sub, (target // row_bytes) // sub * sub)
    else:
        rt = max(sub, _round_up(row_tile, sub))
    rt = min(rt, _round_up(R, sub))
    grid = (pl.cdiv(R, rt),)

    # TODO(synk): on v7x, verify "parallel" shards this 1-D row grid across the
    # 2 TensorCores; if not, switch this axis to pltpu.CORE_PARALLEL.
    compiler_params = pltpu.CompilerParams(
        dimension_semantics=("parallel",),
        vmem_limit_bytes=vmem_limit)

    if use_single_cond:
        s2 = single_cond.reshape(-1, c_cond)
        assert s2.shape[0] == R

        mm_dtype = jnp.dtype(matmul_dtype)
        gamma = params["single_cond_ln_weight"].reshape(1, c_cond).astype(jnp.float32)
        # nn.Linear stores weight as (out, in).  Stack scale+bias weights along
        # the out dim and transpose ONCE to (c_cond, 2*c_x): K x N layout with
        # the lane-dense output dim last.  Tiny one-time op.
        w_fused = jnp.concatenate(
            [params["single_cond_scale_weight"],
             params["single_cond_bias_weight"]], axis=0).T.astype(mm_dtype)
        b_scale = params["single_cond_scale_bias"].reshape(1, c_x).astype(jnp.float32)

        cost = pl.CostEstimate(
            flops=2 * R * c_cond * (2 * c_x) + 12 * R * (c_x + c_cond),
            transcendentals=R * c_x + 2 * R,
            bytes_accessed=(R * c_x * in_isize
                            + R * c_cond * s_isize
                            + R * c_x * out_isize
                            + 2 * c_x * c_cond * mm_dtype.itemsize
                            + (c_cond + c_x) * 4))

        kernel = functools.partial(_adaln_cond_kernel, mm_dtype=mm_dtype)
        out = pl.pallas_call(
            kernel,
            out_shape=jax.ShapeDtypeStruct((R, c_x), x.dtype),
            grid_spec=pltpu.PrefetchScalarGridSpec(
                num_scalar_prefetch=0,
                grid=grid,
                in_specs=[
                    pl.BlockSpec((rt, c_x), lambda i: (i, 0)),
                    pl.BlockSpec((rt, c_cond), lambda i: (i, 0)),
                    pl.BlockSpec((1, c_cond), lambda i: (0, 0)),
                    pl.BlockSpec((c_cond, 2 * c_x), lambda i: (0, 0)),
                    pl.BlockSpec((1, c_x), lambda i: (0, 0)),
                ],
                out_specs=pl.BlockSpec((rt, c_x), lambda i: (i, 0)),
            ),
            compiler_params=compiler_params,
            cost_estimate=cost,
        )(x2, s2, gamma, w_fused, b_scale)
    else:
        w = params["ln_weight"].reshape(1, c_x).astype(jnp.float32)
        b = params["ln_bias"].reshape(1, c_x).astype(jnp.float32)

        cost = pl.CostEstimate(
            flops=8 * R * c_x,
            transcendentals=R,
            bytes_accessed=R * c_x * (in_isize + out_isize) + 2 * c_x * 4)

        out = pl.pallas_call(
            _plain_ln_kernel,
            out_shape=jax.ShapeDtypeStruct((R, c_x), x.dtype),
            grid_spec=pltpu.PrefetchScalarGridSpec(
                num_scalar_prefetch=0,
                grid=grid,
                in_specs=[
                    pl.BlockSpec((rt, c_x), lambda i: (i, 0)),
                    pl.BlockSpec((1, c_x), lambda i: (0, 0)),
                    pl.BlockSpec((1, c_x), lambda i: (0, 0)),
                ],
                out_specs=pl.BlockSpec((rt, c_x), lambda i: (i, 0)),
            ),
            compiler_params=compiler_params,
            cost_estimate=cost,
        )(x2, w, b)

    return out.reshape(orig_shape)


# ---------------------------------------------------------------------------
# Pure-JAX reference for validation (two-pass LN, f32 matmuls)
# ---------------------------------------------------------------------------
def _reference(x, single_cond, params, use_single_cond):
    def ln(v, weight=None, bias=None):
        mu = jnp.mean(v, axis=-1, keepdims=True)
        var = jnp.mean((v - mu) ** 2, axis=-1, keepdims=True)
        y = (v - mu) / jnp.sqrt(var + EPS)
        if weight is not None:
            y = y * weight
        if bias is not None:
            y = y + bias
        return y

    if use_single_cond:
        x_n = ln(x)
        s_n = ln(single_cond, params["single_cond_ln_weight"])
        scale = s_n @ params["single_cond_scale_weight"].T + params["single_cond_scale_bias"]
        bias = s_n @ params["single_cond_bias_weight"].T
        return jax.nn.sigmoid(scale) * x_n + bias
    else:
        return ln(x, params["ln_weight"], params["ln_bias"])


# ---------------------------------------------------------------------------
# Main
# ---------------------------------------------------------------------------
if __name__ == "__main__":
    key = jax.random.PRNGKey(0)
    batch, seq = 2, 64
    c_x, c_single_cond = 128, 64  # lane-dense feature dim (multiple of 128)

    k = jax.random.split(key, 8)
    x = jax.random.normal(k[0], (batch, seq, c_x), dtype=jnp.float32)
    single_cond = jax.random.normal(k[1], (batch, seq, c_single_cond),
                                    dtype=jnp.float32)

    params = {
        # use_single_cond=True branch
        "single_cond_ln_weight": jax.random.normal(k[2], (c_single_cond,)) * 0.1 + 1.0,
        "single_cond_scale_weight": jax.random.normal(k[3], (c_x, c_single_cond)) * 0.2,
        "single_cond_scale_bias": jax.random.normal(k[4], (c_x,)) * 0.1,
        "single_cond_bias_weight": jax.random.normal(k[5], (c_x, c_single_cond)) * 0.2,
        # use_single_cond=False branch
        "ln_weight": jax.random.normal(k[6], (c_x,)) * 0.1 + 1.0,
        "ln_bias": jax.random.normal(k[7], (c_x,)) * 0.1,
    }

    # 1) use_single_cond=True path, f32, auto (VMEM-budget) row tile
    out_cond = jax.block_until_ready(
        adaptive_layer_norm(x, single_cond, params, use_single_cond=True))
    ref_cond = _reference(x, single_cond, params, True)
    assert out_cond.shape == x.shape
    assert jnp.allclose(out_cond, ref_cond, atol=1e-4, rtol=1e-4), "cond path mismatch"

    # 2) ragged row count + multi-step grid (exercises cdiv grid, no padding)
    x_r = x[:, :50]
    s_r = single_cond[:, :50]
    out_r = jax.block_until_ready(
        adaptive_layer_norm(x_r, s_r, params, use_single_cond=True, row_tile=32))
    ref_r = _reference(x_r, s_r, params, True)
    assert out_r.shape == x_r.shape
    assert jnp.allclose(out_r, ref_r, atol=1e-4, rtol=1e-4), "ragged cond path mismatch"

    # 3) use_single_cond=False path (plain LayerNorm with affine)
    out_plain = jax.block_until_ready(
        adaptive_layer_norm(x, None, params, use_single_cond=False))
    ref_plain = _reference(x, None, params, False)
    assert jnp.allclose(out_plain, ref_plain, atol=1e-4, rtol=1e-4), "plain path mismatch"

    # 4) bf16 activations (stats and matmul accumulate in f32)
    x_bf = x.astype(jnp.bfloat16)
    s_bf = single_cond.astype(jnp.bfloat16)
    out_bf = jax.block_until_ready(
        adaptive_layer_norm(x_bf, s_bf, params, use_single_cond=True))
    ref_bf = _reference(x_bf.astype(jnp.float32), s_bf.astype(jnp.float32), params, True)
    assert out_bf.dtype == jnp.bfloat16
    assert jnp.allclose(out_bf.astype(jnp.float32), ref_bf, atol=5e-2, rtol=5e-2), \
        "bf16 cond path mismatch"

    print("KERNEL_OK")
</pallas_src>

<mosaic_0001>
module attributes {stable_mosaic.version = 11 : i64} {
  func.func @_adaln_cond_kernel(%arg0: i32, %arg1: memref<128x128xf32, #tpu.memory_space<vmem>>, %arg2: memref<128x64xf32, #tpu.memory_space<vmem>>, %arg3: memref<1x64xf32, #tpu.memory_space<vmem>>, %arg4: memref<64x256xf32, #tpu.memory_space<vmem>>, %arg5: memref<1x128xf32, #tpu.memory_space<vmem>>, %arg6: memref<128x128xf32, #tpu.memory_space<vmem>>) attributes {dimension_semantics = [#tpu.dimension_semantics<parallel>], iteration_bounds = array<i64: 1>, scalar_prefetch = 0 : i64, scratch_operands = 0 : i64, tpu.core_type = #tpu.core_type<tc>, window_params = [{transform_indices = @transform_0, window_bounds = array<i64: 128, 128>}, {transform_indices = @transform_1, window_bounds = array<i64: 128, 64>}, {pipeline_mode = #tpu.pipeline_mode<synchronous>, transform_indices = @transform_2, window_bounds = array<i64: 1, 64>}, {pipeline_mode = #tpu.pipeline_mode<synchronous>, transform_indices = @transform_3, window_bounds = array<i64: 64, 256>}, {pipeline_mode = #tpu.pipeline_mode<synchronous>, transform_indices = @transform_4, window_bounds = array<i64: 1, 128>}, {transform_indices = @transform_5, window_bounds = array<i64: 128, 128>}]} {
    %c0 = arith.constant 0 : index
    %c0_0 = arith.constant 0 : index
    %0 = vector.load %arg1[%c0, %c0_0] : memref<128x128xf32, #tpu.memory_space<vmem>>, vector<128x128xf32>
    %c0_1 = arith.constant 0 : index
    %c0_2 = arith.constant 0 : index
    %1 = vector.load %arg2[%c0_1, %c0_2] : memref<128x64xf32, #tpu.memory_space<vmem>>, vector<128x64xf32>
    %cst = arith.constant dense<0.000000e+00> : vector<128xf32>
    %2 = vector.multi_reduction <add>, %0, %cst [1] : vector<128x128xf32> to vector<128xf32>
    %3 = vector.shape_cast %2 : vector<128xf32> to vector<128x1xf32>
    %cst_3 = arith.constant 1.280000e+02 : f32
    %4 = vector.broadcast %cst_3 : f32 to vector<128x1xf32>
    %5 = arith.divf %3, %4 : vector<128x1xf32>
    %6 = vector.broadcast %5 : vector<128x1xf32> to vector<128x128xf32>
    %7 = arith.subf %0, %6 : vector<128x128xf32>
    %8 = arith.mulf %7, %7 : vector<128x128xf32>
    %cst_4 = arith.constant dense<0.000000e+00> : vector<128xf32>
    %9 = vector.multi_reduction <add>, %8, %cst_4 [1] : vector<128x128xf32> to vector<128xf32>
    %10 = vector.shape_cast %9 : vector<128xf32> to vector<128x1xf32>
    %cst_5 = arith.constant 1.280000e+02 : f32
    %11 = vector.broadcast %cst_5 : f32 to vector<128x1xf32>
    %12 = arith.divf %10, %11 : vector<128x1xf32>
    %cst_6 = arith.constant 9.99999974E-6 : f32
    %13 = vector.broadcast %cst_6 : f32 to vector<128x1xf32>
    %14 = arith.addf %12, %13 : vector<128x1xf32>
    %15 = math.rsqrt %14 : vector<128x1xf32>
    %16 = vector.broadcast %15 : vector<128x1xf32> to vector<128x128xf32>
    %17 = arith.mulf %7, %16 : vector<128x128xf32>
    %cst_7 = arith.constant dense<0.000000e+00> : vector<128xf32>
    %18 = vector.multi_reduction <add>, %1, %cst_7 [1] : vector<128x64xf32> to vector<128xf32>
    %19 = vector.shape_cast %18 : vector<128xf32> to vector<128x1xf32>
    %cst_8 = arith.constant 6.400000e+01 : f32
    %20 = vector.broadcast %cst_8 : f32 to vector<128x1xf32>
    %21 = arith.divf %19, %20 : vector<128x1xf32>
    %22 = vector.broadcast %21 : vector<128x1xf32> to vector<128x64xf32>
    %23 = arith.subf %1, %22 : vector<128x64xf32>
    %24 = arith.mulf %23, %23 : vector<128x64xf32>
    %cst_9 = arith.constant dense<0.000000e+00> : vector<128xf32>
    %25 = vector.multi_reduction <add>, %24, %cst_9 [1] : vector<128x64xf32> to vector<128xf32>
    %26 = vector.shape_cast %25 : vector<128xf32> to vector<128x1xf32>
    %cst_10 = arith.constant 6.400000e+01 : f32
    %27 = vector.broadcast %cst_10 : f32 to vector<128x1xf32>
    %28 = arith.divf %26, %27 : vector<128x1xf32>
    %cst_11 = arith.constant 9.99999974E-6 : f32
    %29 = vector.broadcast %cst_11 : f32 to vector<128x1xf32>
    %30 = arith.addf %28, %29 : vector<128x1xf32>
    %31 = math.rsqrt %30 : vector<128x1xf32>
    %32 = vector.broadcast %31 : vector<128x1xf32> to vector<128x64xf32>
    %33 = arith.mulf %23, %32 : vector<128x64xf32>
    %c0_12 = arith.constant 0 : index
    %c0_13 = arith.constant 0 : index
    %34 = vector.load %arg3[%c0_12, %c0_13] : memref<1x64xf32, #tpu.memory_space<vmem>>, vector<1x64xf32>
    %35 = vector.broadcast %34 : vector<1x64xf32> to vector<128x64xf32>
    %36 = arith.mulf %33, %35 : vector<128x64xf32>
    %c0_14 = arith.constant 0 : index
    %c0_15 = arith.constant 0 : index
    %37 = vector.load %arg4[%c0_14, %c0_15] : memref<64x256xf32, #tpu.memory_space<vmem>>, vector<64x256xf32>
    %cst_16 = arith.constant dense<0.000000e+00> : vector<128x256xf32>
    %38 = tpu.matmul %36, %37, %cst_16 {dimension_numbers = #tpu.dot_dimension_numbers<[1], [0], [0], [1], [0, 0, 1, 1], [], []>} : vector<128x64xf32>, vector<64x256xf32>, vector<128x256xf32> -> vector<128x256xf32>
    %39 = vector.extract_strided_slice %38 {offsets = [0, 0], sizes = [128, 128], strides = [1, 1]} : vector<128x256xf32> to vector<128x128xf32>
    %c0_17 = arith.constant 0 : index
    %c0_18 = arith.constant 0 : index
    %40 = vector.load %arg5[%c0_17, %c0_18] : memref<1x128xf32, #tpu.memory_space<vmem>>, vector<1x128xf32>
    %41 = vector.broadcast %40 : vector<1x128xf32> to vector<128x128xf32>
    %42 = arith.addf %39, %41 : vector<128x128xf32>
    %43 = vector.extract_strided_slice %38 {offsets = [0, 128], sizes = [128, 128], strides = [1, 1]} : vector<128x256xf32> to vector<128x128xf32>
    %cst_19 = arith.constant 5.000000e-01 : f32
    %44 = vector.broadcast %cst_19 : f32 to vector<128x128xf32>
    %45 = arith.mulf %44, %42 : vector<128x128xf32>
    %46 = math.tanh %45 : vector<128x128xf32>
    %cst_20 = arith.constant 5.000000e-01 : f32
    %47 = vector.broadcast %cst_20 : f32 to vector<128x128xf32>
    %48 = arith.mulf %47, %46 : vector<128x128xf32>
    %cst_21 = arith.constant 5.000000e-01 : f32
    %49 = vector.broadcast %cst_21 : f32 to vector<128x128xf32>
    %50 = arith.addf %48, %49 : vector<128x128xf32>
    %51 = arith.mulf %50, %17 : vector<128x128xf32>
    %52 = arith.addf %51, %43 : vector<128x128xf32>
    %c0_22 = arith.constant 0 : index
    %c0_23 = arith.constant 0 : index
    %53 = vector.load %arg6[%c0_22, %c0_23] : memref<128x128xf32, #tpu.memory_space<vmem>>, vector<128x128xf32>
    tpu.vector_store %arg6[%c0_22, %c0_23], %52 {strides = array<i32>} : memref<128x128xf32, #tpu.memory_space<vmem>>, vector<128x128xf32>,
    return
  }
  func.func @transform_0(%arg0: i32) -> (i32, i32) {
    %c0_i32 = arith.constant 0 : i32
    %c0_i32_0 = arith.constant 0 : i32
    return %arg0, %c0_i32 : i32, i32
  }
  func.func @transform_1(%arg0: i32) -> (i32, i32) {
    %c0_i32 = arith.constant 0 : i32
    %c0_i32_0 = arith.constant 0 : i32
    return %arg0, %c0_i32 : i32, i32
  }
  func.func @transform_2(%arg0: i32) -> (i32, i32) {
    %c0_i32 = arith.constant 0 : i32
    %c0_i32_0 = arith.constant 0 : i32
    %c0_i32_1 = arith.constant 0 : i32
    return %c0_i32, %c0_i32_0 : i32, i32
  }
  func.func @transform_3(%arg0: i32) -> (i32, i32) {
    %c0_i32 = arith.constant 0 : i32
    %c0_i32_0 = arith.constant 0 : i32
    %c0_i32_1 = arith.constant 0 : i32
    return %c0_i32, %c0_i32_0 : i32, i32
  }
  func.func @transform_4(%arg0: i32) -> (i32, i32) {
    %c0_i32 = arith.constant 0 : i32
    %c0_i32_0 = arith.constant 0 : i32
    %c0_i32_1 = arith.constant 0 : i32
    return %c0_i32, %c0_i32_0 : i32, i32
  }
  func.func @transform_5(%arg0: i32) -> (i32, i32) {
    %c0_i32 = arith.constant 0 : i32
    %c0_i32_0 = arith.constant 0 : i32
    return %arg0, %c0_i32 : i32, i32
  }
}

</mosaic_0001>

<llo_original>
// kernel: tpu_custom_call.1
$region0: #{tpu_custom_call.1}
  #allocation0 [shape = 'u32[]', space=smem, size = 0x4, offset = 0x4, fixed_abs, tag = 'smem constant byte address 0x4 - core index']
  #allocation1 [shape = 'u32[144,128]{1,0:T(1,128)}', space=vmem, size = 0x12000, scoped, tag = 'internal scratch']
  %s0 = inlined_call_operand.vmem [shape: f32[128,128], index: 0, kind: input, shape index: {}]
  %s1 = inlined_call_operand.vmem [shape: f32[128,64], index: 1, kind: input, shape index: {}]
  %s2 = inlined_call_operand.vmem [shape: f32[1,64], index: 2, kind: input, shape index: {}]
  %s3 = inlined_call_operand.hbm [shape: f32[64,256], index: 3, kind: input, shape index: {}]
  %s4 = inlined_call_operand.vmem [shape: f32[1,128], index: 4, kind: input, shape index: {}]
  %s5 = inlined_call_operand.hbm [shape: f32[128,128], index: 5, kind: output, shape index: {}]
  %s6 = sld [smem:[#allocation0]]
  $region34: #{tpu_custom_call.1} parent=0
    _
  %s8 = ssub.s32 1, %s6
  %s9 = scalar_select 0, %s8, %s6
  $region1: #{tpu_custom_call.1} parent=0
    #allocation2 [shape = 'u8[65536]{0}', space=vmem, size = 0x10000, scoped, tag = 'input window, operand 3, single buffered']
    #allocation3 [shape = 's32[1]{0}', space=sflag, size = 0x4, scoped, tag = 'scoped memory for tpu_custom_call.1']
    #allocation4 [shape = 's32[1]{0}', space=sflag, size = 0x4, scoped, tag = 'scoped memory for tpu_custom_call.1']
    #allocation5 [shape = 'u8[65536]{0}', space=vmem, size = 0x10000, scoped, tag = 'output window, operand 0, single buffered']
    %10 = vsyncpa [#allocation3], 0
    %11 = vsyncpa [#allocation4], 0
    // Predicated region
    $region2: #{tpu_custom_call.1} parent=1 // pred_check
      _
    $region3: #{tpu_custom_call.1} parent=1 // pred_check_branch
      %13 = sbr.rel (0) target = $region5
    $region4: #{tpu_custom_call.1} parent=1 // pred_region
      _
    $region5: #{tpu_custom_call.1} parent=1 // pred_fallthru
      _
    // Predicated region
    $region6: #{tpu_custom_call.1} parent=1 // pred_check
      _
    $region7: #{tpu_custom_call.1} parent=1 // pred_check_branch
      %15 = sbr.rel (0) target = $region9
    $region8: #{tpu_custom_call.1} parent=1 // pred_region
      _
    $region9: #{tpu_custom_call.1} parent=1 // pred_fallthru
      _
    // Predicated region
    $region10: #{tpu_custom_call.1} parent=1 // pred_check
      _
    $region11: #{tpu_custom_call.1} parent=1 // pred_check_branch
      %17 = sbr.rel (0) target = $region13
    $region12: #{tpu_custom_call.1} parent=1 // pred_region
      _
    $region13: #{tpu_custom_call.1} parent=1 // pred_fallthru
      _
    // Predicated region
    $region14: #{tpu_custom_call.1} parent=1 // pred_check
      _
    $region15: #{tpu_custom_call.1} parent=1 // pred_check_branch
      %19 = sbr.rel (0) target = $region17
    $region16: #{tpu_custom_call.1} parent=1 // pred_region
      %s21 = ssub.s32 2048, 2048
      %22 = vsyncadd [#allocation3], %s21
      %s23 = sshll.u32 [#allocation2], 4
      %s24 = int_to_ptr.vmem [resolvable:$true] %s23
      %29 = dma.hbm_to_vmem [thread:$0]  %s3, 2048, %s24, [#allocation3], 256, 256, 16
    $region17: #{tpu_custom_call.1} parent=1 // pred_fallthru
      _
    // Predicated region
    $region18: #{tpu_custom_call.1} parent=1 // pred_check
      _
    $region19: #{tpu_custom_call.1} parent=1 // pred_check_branch
      %31 = sbr.rel (0) target = $region21
    $region20: #{tpu_custom_call.1} parent=1 // pred_region
      _
    $region21: #{tpu_custom_call.1} parent=1 // pred_fallthru
      _
    // Predicated region
    $region22: #{tpu_custom_call.1} parent=1 // pred_check
      _
    $region23: #{tpu_custom_call.1} parent=1 // pred_check_branch
      %33 = sbr.rel (0) target = $region25
    $region24: #{tpu_custom_call.1} parent=1 // pred_region
      %34 = dma.done [#allocation3], 2048
    $region25: #{tpu_custom_call.1} parent=1 // pred_fallthru
      _
    %v35 = vld [vmem:[%s0] sm:$0xff]
    %v36 = vld [vmem:[%s0 + $0x8] sm:$0xff]
    %v37 = vld [vmem:[%s0 + $0x10] sm:$0xff]
    %v38 = vld [vmem:[%s0 + $0x18] sm:$0xff]
    %v39 = vld [vmem:[%s0 + $0x20] sm:$0xff]
    %v40 = vld [vmem:[%s0 + $0x28] sm:$0xff]
    %v41 = vld [vmem:[%s0 + $0x30] sm:$0xff]
    %v42 = vld [vmem:[%s0 + $0x38] sm:$0xff]
    %v43 = vld [vmem:[%s0 + $0x40] sm:$0xff]
    %v44 = vld [vmem:[%s0 + $0x48] sm:$0xff]
    %v45 = vld [vmem:[%s0 + $0x50] sm:$0xff]
    %v46 = vld [vmem:[%s0 + $0x58] sm:$0xff]
    %v47 = vld [vmem:[%s0 + $0x60] sm:$0xff]
    %v48 = vld [vmem:[%s0 + $0x68] sm:$0xff]
    %v49 = vld [vmem:[%s0 + $0x70] sm:$0xff]
    %v50 = vld [vmem:[%s0 + $0x78] sm:$0xff]
    %v51 = vld [vmem:[%s1] sm:$0xff]
    %v52 = vld [vmem:[%s1 + $0x8] sm:$0xff]
    %v53 = vld [vmem:[%s1 + $0x10] sm:$0xff]
    %v54 = vld [vmem:[%s1 + $0x18] sm:$0xff]
    %v55 = vld [vmem:[%s1 + $0x20] sm:$0xff]
    %v56 = vld [vmem:[%s1 + $0x28] sm:$0xff]
    %v57 = vld [vmem:[%s1 + $0x30] sm:$0xff]
    %v58 = vld [vmem:[%s1 + $0x38] sm:$0xff]
    %v59 = vld [vmem:[%s1 + $0x40] sm:$0xff]
    %v60 = vld [vmem:[%s1 + $0x48] sm:$0xff]
    %v61 = vld [vmem:[%s1 + $0x50] sm:$0xff]
    %v62 = vld [vmem:[%s1 + $0x58] sm:$0xff]
    %v63 = vld [vmem:[%s1 + $0x60] sm:$0xff]
    %v64 = vld [vmem:[%s1 + $0x68] sm:$0xff]
    %v65 = vld [vmem:[%s1 + $0x70] sm:$0xff]
    %v66 = vld [vmem:[%s1 + $0x78] sm:$0xff]
    %67 = vadd.xlane.f32.xlu0 %v35
    %v68 = vpop.xlane.xlu0 %67
    %69 = vadd.xlane.f32.xlu0 %v36
    %v70 = vpop.xlane.xlu0 %69
    %71 = vadd.xlane.f32.xlu0 %v37
    %v72 = vpop.xlane.xlu0 %71
    %73 = vadd.xlane.f32.xlu0 %v38
    %v74 = vpop.xlane.xlu0 %73
    %75 = vadd.xlane.f32.xlu0 %v39
    %v76 = vpop.xlane.xlu0 %75
    %77 = vadd.xlane.f32.xlu0 %v40
    %v78 = vpop.xlane.xlu0 %77
    %79 = vadd.xlane.f32.xlu0 %v41
    %v80 = vpop.xlane.xlu0 %79
    %81 = vadd.xlane.f32.xlu0 %v42
    %v82 = vpop.xlane.xlu0 %81
    %83 = vadd.xlane.f32.xlu0 %v43
    %v84 = vpop.xlane.xlu0 %83
    %85 = vadd.xlane.f32.xlu0 %v44
    %v86 = vpop.xlane.xlu0 %85
    %87 = vadd.xlane.f32.xlu0 %v45
    %v88 = vpop.xlane.xlu0 %87
    %89 = vadd.xlane.f32.xlu0 %v46
    %v90 = vpop.xlane.xlu0 %89
    %91 = vadd.xlane.f32.xlu0 %v47
    %v92 = vpop.xlane.xlu0 %91
    %93 = vadd.xlane.f32.xlu0 %v48
    %v94 = vpop.xlane.xlu0 %93
    %95 = vadd.xlane.f32.xlu0 %v49
    %v96 = vpop.xlane.xlu0 %95
    %97 = vadd.xlane.f32.xlu0 %v50
    %v98 = vpop.xlane.xlu0 %97
    %v99 = vrcp.pop 128.0
    %v100 = vmul.f32 %v68, %v99
    %v101 = vmul.f32 %v70, %v99
    %v102 = vmul.f32 %v72, %v99
    %v103 = vmul.f32 %v74, %v99
    %v104 = vmul.f32 %v76, %v99
    %v105 = vmul.f32 %v78, %v99
    %v106 = vmul.f32 %v80, %v99
    %v107 = vmul.f32 %v82, %v99
    %v108 = vmul.f32 %v84, %v99
    %v109 = vmul.f32 %v86, %v99
    %v110 = vmul.f32 %v88, %v99
    %v111 = vmul.f32 %v90, %v99
    %v112 = vmul.f32 %v92, %v99
    %v113 = vmul.f32 %v94, %v99
    %v114 = vmul.f32 %v96, %v99
    %v115 = vmul.f32 %v98, %v99
    %v116 = vsub.f32 %v35, %v100
    %v117 = vsub.f32 %v36, %v101
    %v118 = vsub.f32 %v37, %v102
    %v119 = vsub.f32 %v38, %v103
    %v120 = vsub.f32 %v39, %v104
    %v121 = vsub.f32 %v40, %v105
    %v122 = vsub.f32 %v41, %v106
    %v123 = vsub.f32 %v42, %v107
    %v124 = vsub.f32 %v43, %v108
    %v125 = vsub.f32 %v44, %v109
    %v126 = vsub.f32 %v45, %v110
    %v127 = vsub.f32 %v46, %v111
    %v128 = vsub.f32 %v47, %v112
    %v129 = vsub.f32 %v48, %v113
    %v130 = vsub.f32 %v49, %v114
    %v131 = vsub.f32 %v50, %v115
    %v132 = vmul.f32 %v116, %v116
    %v133 = vmul.f32 %v117, %v117
    %v134 = vmul.f32 %v118, %v118
    %v135 = vmul.f32 %v119, %v119
    %v136 = vmul.f32 %v120, %v120
    %v137 = vmul.f32 %v121, %v121
    %v138 = vmul.f32 %v122, %v122
    %v139 = vmul.f32 %v123, %v123
    %v140 = vmul.f32 %v124, %v124
    %v141 = vmul.f32 %v125, %v125
    %v142 = vmul.f32 %v126, %v126
    %v143 = vmul.f32 %v127, %v127
    %v144 = vmul.f32 %v128, %v128
    %v145 = vmul.f32 %v129, %v129
    %v146 = vmul.f32 %v130, %v130
    %v147 = vmul.f32 %v131, %v131
    %148 = vadd.xlane.f32.xlu0 %v132
    %v149 = vpop.xlane.xlu0 %148
    %150 = vadd.xlane.f32.xlu0 %v133
    %v151 = vpop.xlane.xlu0 %150
    %152 = vadd.xlane.f32.xlu0 %v134
    %v153 = vpop.xlane.xlu0 %152
    %154 = vadd.xlane.f32.xlu0 %v135
    %v155 = vpop.xlane.xlu0 %154
    %156 = vadd.xlane.f32.xlu0 %v136
    %v157 = vpop.xlane.xlu0 %156
    %158 = vadd.xlane.f32.xlu0 %v137
    %v159 = vpop.xlane.xlu0 %158
    %160 = vadd.xlane.f32.xlu0 %v138
    %v161 = vpop.xlane.xlu0 %160
    %162 = vadd.xlane.f32.xlu0 %v139
    %v163 = vpop.xlane.xlu0 %162
    %164 = vadd.xlane.f32.xlu0 %v140
    %v165 = vpop.xlane.xlu0 %164
    %166 = vadd.xlane.f32.xlu0 %v141
    %v167 = vpop.xlane.xlu0 %166
    %168 = vadd.xlane.f32.xlu0 %v142
    %v169 = vpop.xlane.xlu0 %168
    %170 = vadd.xlane.f32.xlu0 %v143
    %v171 = vpop.xlane.xlu0 %170
    %172 = vadd.xlane.f32.xlu0 %v144
    %v173 = vpop.xlane.xlu0 %172
    %174 = vadd.xlane.f32.xlu0 %v145
    %v175 = vpop.xlane.xlu0 %174
    %176 = vadd.xlane.f32.xlu0 %v146
    %v177 = vpop.xlane.xlu0 %176
    %178 = vadd.xlane.f32.xlu0 %v147
    %v179 = vpop.xlane.xlu0 %178
    %v180 = vmul.f32 %v149, %v99
    %v181 = vmul.f32 %v151, %v99
    %v182 = vmul.f32 %v153, %v99
    %v183 = vmul.f32 %v155, %v99
    %v184 = vmul.f32 %v157, %v99
    %v185 = vmul.f32 %v159, %v99
    %v186 = vmul.f32 %v161, %v99
    %v187 = vmul.f32 %v163, %v99
    %v188 = vmul.f32 %v165, %v99
    %v189 = vmul.f32 %v167, %v99
    %v190 = vmul.f32 %v169, %v99
    %v191 = vmul.f32 %v171, %v99
    %v192 = vmul.f32 %v173, %v99
    %v193 = vmul.f32 %v175, %v99
    %v194 = vmul.f32 %v177, %v99
    %v195 = vmul.f32 %v179, %v99
    %v196 = vadd.f32 %v180, 1e-05
    %v197 = vadd.f32 %v181, 1e-05
    %v198 = vadd.f32 %v182, 1e-05
    %v199 = vadd.f32 %v183, 1e-05
    %v200 = vadd.f32 %v184, 1e-05
    %v201 = vadd.f32 %v185, 1e-05
    %v202 = vadd.f32 %v186, 1e-05
    %v203 = vadd.f32 %v187, 1e-05
    %v204 = vadd.f32 %v188, 1e-05
    %v205 = vadd.f32 %v189, 1e-05
    %v206 = vadd.f32 %v190, 1e-05
    %v207 = vadd.f32 %v191, 1e-05
    %v208 = vadd.f32 %v192, 1e-05
    %v209 = vadd.f32 %v193, 1e-05
    %v210 = vadd.f32 %v194, 1e-05
    %v211 = vadd.f32 %v195, 1e-05
    %v212 = vrsqrt.pop %v196
    %v213 = vrsqrt.pop %v197
    %v214 = vrsqrt.pop %v198
    %v215 = vrsqrt.pop %v199
    %v216 = vrsqrt.pop %v200
    %v217 = vrsqrt.pop %v201
    %v218 = vrsqrt.pop %v202
    %v219 = vrsqrt.pop %v203
    %v220 = vrsqrt.pop %v204
    %v221 = vrsqrt.pop %v205
    %v222 = vrsqrt.pop %v206
    %v223 = vrsqrt.pop %v207
    %v224 = vrsqrt.pop %v208
    %v225 = vrsqrt.pop %v209
    %v226 = vrsqrt.pop %v210
    %v227 = vrsqrt.pop %v211
    %v228 = vmul.f32 %v116, %v212
    %v229 = vmul.f32 %v117, %v213
    %v230 = vmul.f32 %v118, %v214
    %v231 = vmul.f32 %v119, %v215
    %v232 = vmul.f32 %v120, %v216
    %v233 = vmul.f32 %v121, %v217
    %v234 = vmul.f32 %v122, %v218
    %v235 = vmul.f32 %v123, %v219
    %v236 = vmul.f32 %v124, %v220
    %v237 = vmul.f32 %v125, %v221
    %v238 = vmul.f32 %v126, %v222
    %v239 = vmul.f32 %v127, %v223
    %v240 = vmul.f32 %v128, %v224
    %v241 = vmul.f32 %v129, %v225
    %v242 = vmul.f32 %v130, %v226
    %v243 = vmul.f32 %v131, %v227
    %vm244 = vcmask 523264
    %v245 = vsel %vm244, %v51, 0.0
    %246 = vadd.xlane.f32.xlu0 %v245
    %v247 = vpop.xlane.xlu0 %246
    %v248 = vsel %vm244, %v52, 0.0
    %249 = vadd.xlane.f32.xlu0 %v248
    %v250 = vpop.xlane.xlu0 %249
    %v251 = vsel %vm244, %v53, 0.0
    %252 = vadd.xlane.f32.xlu0 %v251
    %v253 = vpop.xlane.xlu0 %252
    %v254 = vsel %vm244, %v54, 0.0
    %255 = vadd.xlane.f32.xlu0 %v254
    %v256 = vpop.xlane.xlu0 %255
    %v257 = vsel %vm244, %v55, 0.0
    %258 = vadd.xlane.f32.xlu0 %v257
    %v259 = vpop.xlane.xlu0 %258
    %v260 = vsel %vm244, %v56, 0.0
    %261 = vadd.xlane.f32.xlu0 %v260
    %v262 = vpop.xlane.xlu0 %261
    %v263 = vsel %vm244, %v57, 0.0
    %264 = vadd.xlane.f32.xlu0 %v263
    %v265 = vpop.xlane.xlu0 %264
    %v266 = vsel %vm244, %v58, 0.0
    %267 = vadd.xlane.f32.xlu0 %v266
    %v268 = vpop.xlane.xlu0 %267
    %v269 = vsel %vm244, %v59, 0.0
    %270 = vadd.xlane.f32.xlu0 %v269
    %v271 = vpop.xlane.xlu0 %270
    %v272 = vsel %vm244, %v60, 0.0
    %273 = vadd.xlane.f32.xlu0 %v272
    %v274 = vpop.xlane.xlu0 %273
    %v275 = vsel %vm244, %v61, 0.0
    %276 = vadd.xlane.f32.xlu0 %v275
    %v277 = vpop.xlane.xlu0 %276
    %v278 = vsel %vm244, %v62, 0.0
    %279 = vadd.xlane.f32.xlu0 %v278
    %v280 = vpop.xlane.xlu0 %279
    %v281 = vsel %vm244, %v63, 0.0
    %282 = vadd.xlane.f32.xlu0 %v281
    %v283 = vpop.xlane.xlu0 %282
    %v284 = vsel %vm244, %v64, 0.0
    %285 = vadd.xlane.f32.xlu0 %v284
    %v286 = vpop.xlane.xlu0 %285
    %v287 = vsel %vm244, %v65, 0.0
    %288 = vadd.xlane.f32.xlu0 %v287
    %v289 = vpop.xlane.xlu0 %288
    %v290 = vsel %vm244, %v66, 0.0
    %291 = vadd.xlane.f32.xlu0 %v290
    %v292 = vpop.xlane.xlu0 %291
    %v293 = vrcp.pop 64.0
    %v294 = vmul.f32 %v247, %v293
    %v295 = vmul.f32 %v250, %v293
    %v296 = vmul.f32 %v253, %v293
    %v297 = vmul.f32 %v256, %v293
    %v298 = vmul.f32 %v259, %v293
    %v299 = vmul.f32 %v262, %v293
    %v300 = vmul.f32 %v265, %v293
    %v301 = vmul.f32 %v268, %v293
    %v302 = vmul.f32 %v271, %v293
    %v303 = vmul.f32 %v274, %v293
    %v304 = vmul.f32 %v277, %v293
    %v305 = vmul.f32 %v280, %v293
    %v306 = vmul.f32 %v283, %v293
    %v307 = vmul.f32 %v286, %v293
    %v308 = vmul.f32 %v289, %v293
    %v309 = vmul.f32 %v292, %v293
    %v310 = vsub.f32 %v51, %v294
    %v311 = vsub.f32 %v52, %v295
    %v312 = vsub.f32 %v53, %v296
    %v313 = vsub.f32 %v54, %v297
    %v314 = vsub.f32 %v55, %v298
    %v315 = vsub.f32 %v56, %v299
    %v316 = vsub.f32 %v57, %v300
    %v317 = vsub.f32 %v58, %v301
    %v318 = vsub.f32 %v59, %v302
    %v319 = vsub.f32 %v60, %v303
    %v320 = vsub.f32 %v61, %v304
    %v321 = vsub.f32 %v62, %v305
    %v322 = vsub.f32 %v63, %v306
    %v323 = vsub.f32 %v64, %v307
    %v324 = vsub.f32 %v65, %v308
    %v325 = vsub.f32 %v66, %v309
    %v326 = vmul.f32 %v310, %v310
    %v327 = vmul.f32 %v311, %v311
    %v328 = vmul.f32 %v312, %v312
    %v329 = vmul.f32 %v313, %v313
    %v330 = vmul.f32 %v314, %v314
    %v331 = vmul.f32 %v315, %v315
    %v332 = vmul.f32 %v316, %v316
    %v333 = vmul.f32 %v317, %v317
    %v334 = vmul.f32 %v318, %v318
    %v335 = vmul.f32 %v319, %v319
    %v336 = vmul.f32 %v320, %v320
    %v337 = vmul.f32 %v321, %v321
    %v338 = vmul.f32 %v322, %v322
    %v339 = vmul.f32 %v323, %v323
    %v340 = vmul.f32 %v324, %v324
    %v341 = vmul.f32 %v325, %v325
    %v342 = vsel %vm244, %v326, 0.0
    %343 = vadd.xlane.f32.xlu0 %v342
    %v344 = vpop.xlane.xlu0 %343
    %v345 = vsel %vm244, %v327, 0.0
    %346 = vadd.xlane.f32.xlu0 %v345
    %v347 = vpop.xlane.xlu0 %346
    %v348 = vsel %vm244, %v328, 0.0
    %349 = vadd.xlane.f32.xlu0 %v348
    %v350 = vpop.xlane.xlu0 %349
    %v351 = vsel %vm244, %v329, 0.0
    %352 = vadd.xlane.f32.xlu0 %v351
    %v353 = vpop.xlane.xlu0 %352
    %v354 = vsel %vm244, %v330, 0.0
    %355 = vadd.xlane.f32.xlu0 %v354
    %v356 = vpop.xlane.xlu0 %355
    %v357 = vsel %vm244, %v331, 0.0
    %358 = vadd.xlane.f32.xlu0 %v357
    %v359 = vpop.xlane.xlu0 %358
    %v360 = vsel %vm244, %v332, 0.0
    %361 = vadd.xlane.f32.xlu0 %v360
    %v362 = vpop.xlane.xlu0 %361
    %v363 = vsel %vm244, %v333, 0.0
    %364 = vadd.xlane.f32.xlu0 %v363
    %v365 = vpop.xlane.xlu0 %364
    %v366 = vsel %vm244, %v334, 0.0
    %367 = vadd.xlane.f32.xlu0 %v366
    %v368 = vpop.xlane.xlu0 %367
    %v369 = vsel %vm244, %v335, 0.0
    %370 = vadd.xlane.f32.xlu0 %v369
    %v371 = vpop.xlane.xlu0 %370
    %v372 = vsel %vm244, %v336, 0.0
    %373 = vadd.xlane.f32.xlu0 %v372
    %v374 = vpop.xlane.xlu0 %373
    %v375 = vsel %vm244, %v337, 0.0
    %376 = vadd.xlane.f32.xlu0 %v375
    %v377 = vpop.xlane.xlu0 %376
    %v378 = vsel %vm244, %v338, 0.0
    %379 = vadd.xlane.f32.xlu0 %v378
    %v380 = vpop.xlane.xlu0 %379
    %v381 = vsel %vm244, %v339, 0.0
    %382 = vadd.xlane.f32.xlu0 %v381
    %v383 = vpop.xlane.xlu0 %382
    %v384 = vsel %vm244, %v340, 0.0
    %385 = vadd.xlane.f32.xlu0 %v384
    %v386 = vpop.xlane.xlu0 %385
    %v387 = vsel %vm244, %v341, 0.0
    %388 = vadd.xlane.f32.xlu0 %v387
    %v389 = vpop.xlane.xlu0 %388
    %v390 = vmul.f32 %v344, %v293
    %v391 = vmul.f32 %v347, %v293
    %v392 = vmul.f32 %v350, %v293
    %v393 = vmul.f32 %v353, %v293
    %v394 = vmul.f32 %v356, %v293
    %v395 = vmul.f32 %v359, %v293
    %v396 = vmul.f32 %v362, %v293
    %v397 = vmul.f32 %v365, %v293
    %v398 = vmul.f32 %v368, %v293
    %v399 = vmul.f32 %v371, %v293
    %v400 = vmul.f32 %v374, %v293
    %v401 = vmul.f32 %v377, %v293
    %v402 = vmul.f32 %v380, %v293
    %v403 = vmul.f32 %v383, %v293
    %v404 = vmul.f32 %v386, %v293
    %v405 = vmul.f32 %v389, %v293
    %v406 = vadd.f32 %v390, 1e-05
    %v407 = vadd.f32 %v391, 1e-05
    %v408 = vadd.f32 %v392, 1e-05
    %v409 = vadd.f32 %v393, 1e-05
    %v410 = vadd.f32 %v394, 1e-05
    %v411 = vadd.f32 %v395, 1e-05
    %v412 = vadd.f32 %v396, 1e-05
    %v413 = vadd.f32 %v397, 1e-05
    %v414 = vadd.f32 %v398, 1e-05
    %v415 = vadd.f32 %v399, 1e-05
    %v416 = vadd.f32 %v400, 1e-05
    %v417 = vadd.f32 %v401, 1e-05
    %v418 = vadd.f32 %v402, 1e-05
    %v419 = vadd.f32 %v403, 1e-05
    %v420 = vadd.f32 %v404, 1e-05
    %v421 = vadd.f32 %v405, 1e-05
    %v422 = vrsqrt.pop %v406
    %v423 = vrsqrt.pop %v407
    %v424 = vrsqrt.pop %v408
    %v425 = vrsqrt.pop %v409
    %v426 = vrsqrt.pop %v410
    %v427 = vrsqrt.pop %v411
    %v428 = vrsqrt.pop %v412
    %v429 = vrsqrt.pop %v413
    %v430 = vrsqrt.pop %v414
    %v431 = vrsqrt.pop %v415
    %v432 = vrsqrt.pop %v416
    %v433 = vrsqrt.pop %v417
    %v434 = vrsqrt.pop %v418
    %v435 = vrsqrt.pop %v419
    %v436 = vrsqrt.pop %v420
    %v437 = vrsqrt.pop %v421
    %v438 = vmul.f32 %v310, %v422
    %v439 = vmul.f32 %v311, %v423
    %v440 = vmul.f32 %v312, %v424
    %v441 = vmul.f32 %v313, %v425
    %v442 = vmul.f32 %v314, %v426
    %v443 = vmul.f32 %v315, %v427
    %v444 = vmul.f32 %v316, %v428
    %v445 = vmul.f32 %v317, %v429
    %v446 = vmul.f32 %v318, %v430
    %v447 = vmul.f32 %v319, %v431
    %v448 = vmul.f32 %v320, %v432
    %v449 = vmul.f32 %v321, %v433
    %v450 = vmul.f32 %v322, %v434
    %v451 = vmul.f32 %v323, %v435
    %v452 = vmul.f32 %v324, %v436
    %v453 = vmul.f32 %v325, %v437
    %v454 = vld [vmem:[%s2] sm:$0x1]
    %v456 = vlaneseq
    %v457 = vshrl.u32 %v456, 7
    %v458 = vsub.s32 0, %v457
    %v459 = vrot.slane %v454, %v458
    %v461 = vmul.f32 %v438, %v459
    %v462 = vmul.f32 %v439, %v459
    %v463 = vmul.f32 %v440, %v459
    %v464 = vmul.f32 %v441, %v459
    %v465 = vmul.f32 %v442, %v459
    %v466 = vmul.f32 %v443, %v459
    %v467 = vmul.f32 %v444, %v459
    %v468 = vmul.f32 %v445, %v459
    %v469 = vmul.f32 %v446, %v459
    %v470 = vmul.f32 %v447, %v459
    %v471 = vmul.f32 %v448, %v459
    %v472 = vmul.f32 %v449, %v459
    %v473 = vmul.f32 %v450, %v459
    %v474 = vmul.f32 %v451, %v459
    %v475 = vmul.f32 %v452, %v459
    %v476 = vmul.f32 %v453, %v459
    %v477 = vld [vmem:[#allocation2] sm:$0xff]
    %v478 = vld [vmem:[#allocation2 + $0x8] sm:$0xff]
    %v479 = vld [vmem:[#allocation2 + $0x10] sm:$0xff]
    %v480 = vld [vmem:[#allocation2 + $0x18] sm:$0xff]
    %v481 = vld [vmem:[#allocation2 + $0x20] sm:$0xff]
    %v482 = vld [vmem:[#allocation2 + $0x28] sm:$0xff]
    %v483 = vld [vmem:[#allocation2 + $0x30] sm:$0xff]
    %v484 = vld [vmem:[#allocation2 + $0x38] sm:$0xff]
    %v485 = vld [vmem:[#allocation2 + $0x40] sm:$0xff]
    %v486 = vld [vmem:[#allocation2 + $0x48] sm:$0xff]
    %v487 = vld [vmem:[#allocation2 + $0x50] sm:$0xff]
    %v488 = vld [vmem:[#allocation2 + $0x58] sm:$0xff]
    %v489 = vld [vmem:[#allocation2 + $0x60] sm:$0xff]
    %v490 = vld [vmem:[#allocation2 + $0x68] sm:$0xff]
    %v491 = vld [vmem:[#allocation2 + $0x70] sm:$0xff]
    %v492 = vld [vmem:[#allocation2 + $0x78] sm:$0xff]
    %v494 = vsel %vm244, %v461, 0
    %v497 = vsel %vm244, %v462, 0
    %v500 = vsel %vm244, %v463, 0
    %v503 = vsel %vm244, %v464, 0
    %v506 = vsel %vm244, %v465, 0
    %v509 = vsel %vm244, %v466, 0
    %v512 = vsel %vm244, %v467, 0
    %v515 = vsel %vm244, %v468, 0
    %v518 = vsel %vm244, %v469, 0
    %v521 = vsel %vm244, %v470, 0
    %v524 = vsel %vm244, %v471, 0
    %v527 = vsel %vm244, %v472, 0
    %v530 = vsel %vm244, %v473, 0
    %v533 = vsel %vm244, %v474, 0
    %v536 = vsel %vm244, %v475, 0
    %v539 = vsel %vm244, %v476, 0
    %541 = vmatprep.subr.mxu0 %v478
    %542 = vmatpush1.msra.mxu0 %v477
    %543 = vmatprep.subr.mxu0 %v480
    %544 = vmatpush1.msra.mxu0 %v479
    %545 = vmatprep.subr.mxu0 %v482
    %546 = vmatpush1.msra.mxu0 %v481
    %547 = vmatprep.subr.mxu0 %v484
    %548 = vmatpush1.msra.mxu0 %v483
    %549 = vmatprep.subr.mxu0 %v486
    %550 = vmatpush1.msra.mxu0 %v485
    %551 = vmatprep.subr.mxu0 %v488
    %552 = vmatpush1.msra.mxu0 %v487
    %553 = vmatprep.subr.mxu0 %v490
    %554 = vmatpush1.msra.mxu0 %v489
    %555 = vmatprep.subr.mxu0 %v492
    %556 = vmatpush1.msra.mxu0 %v491
    %557 = vmatprep.subr.mxu0 0.0
    %558 = vmatpush1.msra.mxu0 0.0
    %559 = vmatprep.subr.mxu0 0.0
    %560 = vmatpush1.msra.mxu0 0.0
    %561 = vmatprep.subr.mxu0 0.0
    %562 = vmatpush1.msra.mxu0 0.0
    %563 = vmatprep.subr.mxu0 0.0
    %564 = vmatpush1.msra.mxu0 0.0
    %565 = vmatprep.subr.mxu0 0.0
    %566 = vmatpush1.msra.mxu0 0.0
    %567 = vmatprep.subr.mxu0 0.0
    %568 = vmatpush1.msra.mxu0 0.0
    %569 = vmatprep.subr.mxu0 0.0
    %570 = vmatpush1.msra.mxu0 0.0
    %571 = vmatprep.subr.mxu0 0.0
    %572 = vmatpush1.msra.mxu0 0.0
    %573 = vmatprep.subr.mxu0 0.0
    %574 = vmatpush1.msra.mxu0 0.0
    %575 = vmatprep.subr.mxu0 0.0
    %576 = vmatpush1.msra.mxu0 0.0
    %577 = vmatprep.subr.mxu0 0.0
    %578 = vmatpush1.msra.mxu0 0.0
    %579 = vmatprep.subr.mxu0 0.0
    %580 = vmatpush1.msra.mxu0 0.0
    %581 = vmatprep.subr.mxu0 0.0
    %582 = vmatpush1.msra.mxu0 0.0
    %583 = vmatprep.subr.mxu0 0.0
    %584 = vmatpush1.msra.mxu0 0.0
    %585 = vmatprep.subr.mxu0 0.0
    %586 = vmatpush1.msra.mxu0 0.0
    %587 = vmatprep.subr.mxu0 0.0
    %588 = vmatpush1.msra.mxu0 0.0
    %589 = vmatprep.subr.mxu0 0.0
    %590 = vmatpush1.msra.mxu0 0.0
    %591 = vmatprep.subr.mxu0 0.0
    %592 = vmatpush1.msra.mxu0 0.0
    %593 = vmatprep.subr.mxu0 0.0
    %594 = vmatpush1.msra.mxu0 0.0
    %595 = vmatprep.subr.mxu0 0.0
    %596 = vmatpush1.msra.mxu0 0.0
    %597 = vmatprep.subr.mxu0 0.0
    %598 = vmatpush1.msra.mxu0 0.0
    %599 = vmatprep.subr.mxu0 0.0
    %600 = vmatpush1.msra.mxu0 0.0
    %601 = vmatprep.subr.mxu0 0.0
    %602 = vmatpush1.msra.mxu0 0.0
    %603 = vmatprep.subr.mxu0 0.0
    %604 = vmatpush1.msra.mxu0 0.0
    %605 = vmatprep.mubr.f32.mxu0 0.0
    %606 = vmatmul.mubr.f32.gmra.mrb[0].mxu0 %v494
    %v607 = vpop.f32.mrb[0].mxu0
    %v608 = vadd.f32 0.0, %v607
    %v609 = vpop.f32.mrb[0].mxu0
    %v610 = vadd.f32 0.0, %v609
    %611 = vmatprep.mubr.f32.mxu0 0.0
    %612 = vmatmul.mubr.f32.gmra.mrb[0].mxu0 %v497
    %v613 = vpop.f32.mrb[0].mxu0
    %v614 = vadd.f32 0.0, %v613
    %v615 = vpop.f32.mrb[0].mxu0
    %v616 = vadd.f32 0.0, %v615
    %617 = vmatprep.mubr.f32.mxu0 0.0
    %618 = vmatmul.mubr.f32.gmra.mrb[0].mxu0 %v500
    %v619 = vpop.f32.mrb[0].mxu0
    %v620 = vadd.f32 0.0, %v619
    %v621 = vpop.f32.mrb[0].mxu0
    %v622 = vadd.f32 0.0, %v621
    %623 = vmatprep.mubr.f32.mxu0 0.0
    %624 = vmatmul.mubr.f32.gmra.mrb[0].mxu0 %v503
    %v625 = vpop.f32.mrb[0].mxu0
    %v626 = vadd.f32 0.0, %v625
    %v627 = vpop.f32.mrb[0].mxu0
    %v628 = vadd.f32 0.0, %v627
    %629 = vmatprep.mubr.f32.mxu0 0.0
    %630 = vmatmul.mubr.f32.gmra.mrb[0].mxu0 %v506
    %v631 = vpop.f32.mrb[0].mxu0
    %v632 = vadd.f32 0.0, %v631
    %v633 = vpop.f32.mrb[0].mxu0
    %v634 = vadd.f32 0.0, %v633
    %635 = vmatprep.mubr.f32.mxu0 0.0
    %636 = vmatmul.mubr.f32.gmra.mrb[0].mxu0 %v509
    %v637 = vpop.f32.mrb[0].mxu0
    %v638 = vadd.f32 0.0, %v637
    %v639 = vpop.f32.mrb[0].mxu0
    %v640 = vadd.f32 0.0, %v639
    %641 = vmatprep.mubr.f32.mxu0 0.0
    %642 = vmatmul.mubr.f32.gmra.mrb[0].mxu0 %v512
    %v643 = vpop.f32.mrb[0].mxu0
    %v644 = vadd.f32 0.0, %v643
    %v645 = vpop.f32.mrb[0].mxu0
    %v646 = vadd.f32 0.0, %v645
    %647 = vmatprep.mubr.f32.mxu0 0.0
    %648 = vmatmul.mubr.f32.gmra.mrb[0].mxu0 %v515
    %v649 = vpop.f32.mrb[0].mxu0
    %v650 = vadd.f32 0.0, %v649
    %v651 = vpop.f32.mrb[0].mxu0
    %v652 = vadd.f32 0.0, %v651
    %653 = vmatprep.mubr.f32.mxu0 0.0
    %654 = vmatmul.mubr.f32.gmra.mrb[0].mxu0 %v518
    %v655 = vpop.f32.mrb[0].mxu0
    %v656 = vadd.f32 0.0, %v655
    %v657 = vpop.f32.mrb[0].mxu0
    %v658 = vadd.f32 0.0, %v657
    %659 = vmatprep.mubr.f32.mxu0 0.0
    %660 = vmatmul.mubr.f32.gmra.mrb[0].mxu0 %v521
    %v661 = vpop.f32.mrb[0].mxu0
    %v662 = vadd.f32 0.0, %v661
    %v663 = vpop.f32.mrb[0].mxu0
    %v664 = vadd.f32 0.0, %v663
    %665 = vmatprep.mubr.f32.mxu0 0.0
    %666 = vmatmul.mubr.f32.gmra.mrb[0].mxu0 %v524
    %v667 = vpop.f32.mrb[0].mxu0
    %v668 = vadd.f32 0.0, %v667
    %v669 = vpop.f32.mrb[0].mxu0
    %v670 = vadd.f32 0.0, %v669
    %671 = vmatprep.mubr.f32.mxu0 0.0
    %672 = vmatmul.mubr.f32.gmra.mrb[0].mxu0 %v527
    %v673 = vpop.f32.mrb[0].mxu0
    %v674 = vadd.f32 0.0, %v673
    %v675 = vpop.f32.mrb[0].mxu0
    %v676 = vadd.f32 0.0, %v675
    %677 = vmatprep.mubr.f32.mxu0 0.0
    %678 = vmatmul.mubr.f32.gmra.mrb[0].mxu0 %v530
    %v679 = vpop.f32.mrb[0].mxu0
    %v680 = vadd.f32 0.0, %v679
    %v681 = vpop.f32.mrb[0].mxu0
    %v682 = vadd.f32 0.0, %v681
    %683 = vmatprep.mubr.f32.mxu0 0.0
    %684 = vmatmul.mubr.f32.gmra.mrb[0].mxu0 %v533
    %v685 = vpop.f32.mrb[0].mxu0
    %v686 = vadd.f32 0.0, %v685
    %v687 = vpop.f32.mrb[0].mxu0
    %v688 = vadd.f32 0.0, %v687
    %689 = vmatprep.mubr.f32.mxu0 0.0
    %690 = vmatmul.mubr.f32.gmra.mrb[0].mxu0 %v536
    %v691 = vpop.f32.mrb[0].mxu0
    %v692 = vadd.f32 0.0, %v691
    %v693 = vpop.f32.mrb[0].mxu0
    %v694 = vadd.f32 0.0, %v693
    %695 = vmatprep.mubr.f32.mxu0 0.0
    %696 = vmatmul.mubr.f32.gmra.mrb[0].mxu0 %v539
    %v697 = vpop.f32.mrb[0].mxu0
    %v698 = vadd.f32 0.0, %v697
    %v699 = vpop.f32.mrb[0].mxu0
    %v700 = vadd.f32 0.0, %v699
    %701 = vdwg.mxu0
    %v702 = vld [vmem:[%s4] sm:$0x1]
    %v704 = vlaneseq
    %v705 = vshrl.u32 %v704, 7
    %v706 = vsub.s32 0, %v705
    %v707 = vrot.slane %v702, %v706
    %v709 = vadd.f32 %v608, %v707
    %v710 = vadd.f32 %v614, %v707
    %v711 = vadd.f32 %v620, %v707
    %v712 = vadd.f32 %v626, %v707
    %v713 = vadd.f32 %v632, %v707
    %v714 = vadd.f32 %v638, %v707
    %v715 = vadd.f32 %v644, %v707
    %v716 = vadd.f32 %v650, %v707
    %v717 = vadd.f32 %v656, %v707
    %v718 = vadd.f32 %v662, %v707
    %v719 = vadd.f32 %v668, %v707
    %v720 = vadd.f32 %v674, %v707
    %v721 = vadd.f32 %v680, %v707
    %v722 = vadd.f32 %v686, %v707
    %v723 = vadd.f32 %v692, %v707
    %v724 = vadd.f32 %v698, %v707
    %v725 = vmul.f32 %v709, 0.5
    %v726 = vmul.f32 %v710, 0.5
    %v727 = vmul.f32 %v711, 0.5
    %v728 = vmul.f32 %v712, 0.5
    %v729 = vmul.f32 %v713, 0.5
    %v730 = vmul.f32 %v714, 0.5
    %v731 = vmul.f32 %v715, 0.5
    %v732 = vmul.f32 %v716, 0.5
    %v733 = vmul.f32 %v717, 0.5
    %v734 = vmul.f32 %v718, 0.5
    %v735 = vmul.f32 %v719, 0.5
    %v736 = vmul.f32 %v720, 0.5
    %v737 = vmul.f32 %v721, 0.5
    %v738 = vmul.f32 %v722, 0.5
    %v739 = vmul.f32 %v723, 0.5
    %v740 = vmul.f32 %v724, 0.5
    %v741 = vtanh.pop %v725
    %v742 = vtanh.pop %v726
    %v743 = vtanh.pop %v727
    %v744 = vtanh.pop %v728
    %v745 = vtanh.pop %v729
    %v746 = vtanh.pop %v730
    %v747 = vtanh.pop %v731
    %v748 = vtanh.pop %v732
    %v749 = vtanh.pop %v733
    %v750 = vtanh.pop %v734
    %v751 = vtanh.pop %v735
    %v752 = vtanh.pop %v736
    %v753 = vtanh.pop %v737
    %v754 = vtanh.pop %v738
    %v755 = vtanh.pop %v739
    %v756 = vtanh.pop %v740
    %v757 = vmul.f32 %v741, 0.5
    %v758 = vmul.f32 %v742, 0.5
    %v759 = vmul.f32 %v743, 0.5
    %v760 = vmul.f32 %v744, 0.5
    %v761 = vmul.f32 %v745, 0.5
    %v762 = vmul.f32 %v746, 0.5
    %v763 = vmul.f32 %v747, 0.5
    %v764 = vmul.f32 %v748, 0.5
    %v765 = vmul.f32 %v749, 0.5
    %v766 = vmul.f32 %v750, 0.5
    %v767 = vmul.f32 %v751, 0.5
    %v768 = vmul.f32 %v752, 0.5
    %v769 = vmul.f32 %v753, 0.5
    %v770 = vmul.f32 %v754, 0.5
    %v771 = vmul.f32 %v755, 0.5
    %v772 = vmul.f32 %v756, 0.5
    %v773 = vadd.f32 %v757, 0.5
    %v774 = vadd.f32 %v758, 0.5
    %v775 = vadd.f32 %v759, 0.5
    %v776 = vadd.f32 %v760, 0.5
    %v777 = vadd.f32 %v761, 0.5
    %v778 = vadd.f32 %v762, 0.5
    %v779 = vadd.f32 %v763, 0.5
    %v780 = vadd.f32 %v764, 0.5
    %v781 = vadd.f32 %v765, 0.5
    %v782 = vadd.f32 %v766, 0.5
    %v783 = vadd.f32 %v767, 0.5
    %v784 = vadd.f32 %v768, 0.5
    %v785 = vadd.f32 %v769, 0.5
    %v786 = vadd.f32 %v770, 0.5
    %v787 = vadd.f32 %v771, 0.5
    %v788 = vadd.f32 %v772, 0.5
    %v789 = vmul.f32 %v773, %v228
    %v790 = vmul.f32 %v774, %v229
    %v791 = vmul.f32 %v775, %v230
    %v792 = vmul.f32 %v776, %v231
    %v793 = vmul.f32 %v777, %v232
    %v794 = vmul.f32 %v778, %v233
    %v795 = vmul.f32 %v779, %v234
    %v796 = vmul.f32 %v780, %v235
    %v797 = vmul.f32 %v781, %v236
    %v798 = vmul.f32 %v782, %v237
    %v799 = vmul.f32 %v783, %v238
    %v800 = vmul.f32 %v784, %v239
    %v801 = vmul.f32 %v785, %v240
    %v802 = vmul.f32 %v786, %v241
    %v803 = vmul.f32 %v787, %v242
    %v804 = vmul.f32 %v788, %v243
    %v805 = vadd.f32 %v789, %v610
    %v806 = vadd.f32 %v790, %v616
    %v807 = vadd.f32 %v791, %v622
    %v808 = vadd.f32 %v792, %v628
    %v809 = vadd.f32 %v793, %v634
    %v810 = vadd.f32 %v794, %v640
    %v811 = vadd.f32 %v795, %v646
    %v812 = vadd.f32 %v796, %v652
    %v813 = vadd.f32 %v797, %v658
    %v814 = vadd.f32 %v798, %v664
    %v815 = vadd.f32 %v799, %v670
    %v816 = vadd.f32 %v800, %v676
    %v817 = vadd.f32 %v801, %v682
    %v818 = vadd.f32 %v802, %v688
    %v819 = vadd.f32 %v803, %v694
    %v820 = vadd.f32 %v804, %v700
    %821 = vst [vmem:[#allocation5] sm:$0xff] %v805
    %822 = vst [vmem:[#allocation5 + $0x8] sm:$0xff] %v806
    %823 = vst [vmem:[#allocation5 + $0x10] sm:$0xff] %v807
    %824 = vst [vmem:[#allocation5 + $0x18] sm:$0xff] %v808
    %825 = vst [vmem:[#allocation5 + $0x20] sm:$0xff] %v809
    %826 = vst [vmem:[#allocation5 + $0x28] sm:$0xff] %v810
    %827 = vst [vmem:[#allocation5 + $0x30] sm:$0xff] %v811
    %828 = vst [vmem:[#allocation5 + $0x38] sm:$0xff] %v812
    %829 = vst [vmem:[#allocation5 + $0x40] sm:$0xff] %v813
    %830 = vst [vmem:[#allocation5 + $0x48] sm:$0xff] %v814
    %831 = vst [vmem:[#allocation5 + $0x50] sm:$0xff] %v815
    %832 = vst [vmem:[#allocation5 + $0x58] sm:$0xff] %v816
    %833 = vst [vmem:[#allocation5 + $0x60] sm:$0xff] %v817
    %834 = vst [vmem:[#allocation5 + $0x68] sm:$0xff] %v818
    %835 = vst [vmem:[#allocation5 + $0x70] sm:$0xff] %v819
    %836 = vst [vmem:[#allocation5 + $0x78] sm:$0xff] %v820
    // Predicated region
    $region26: #{tpu_custom_call.1} parent=1 // pred_check
      _
    $region27: #{tpu_custom_call.1} parent=1 // pred_check_branch
      %838 = sbr.rel (0) target = $region29
    $region28: #{tpu_custom_call.1} parent=1 // pred_region
      %s840 = ssub.s32 2048, 2048
      %841 = vsyncadd [#allocation4], %s840
      %s842 = sshll.u32 [#allocation5], 4
      %s843 = int_to_ptr.vmem [resolvable:$true] %s842
      %848 = dma.vmem_to_hbm [thread:$0]  %s843, 2048, %s5, [#allocation4], 128, 128, 8
    $region29: #{tpu_custom_call.1} parent=1 // pred_fallthru
      _
    // Predicated region
    $region30: #{tpu_custom_call.1} parent=1 // pred_check
      _
    $region31: #{tpu_custom_call.1} parent=1 // pred_check_branch
      %850 = sbr.rel (0) target = $region33
    $region32: #{tpu_custom_call.1} parent=1 // pred_region
      %851 = dma.done [#allocation4], 2048
    $region33: #{tpu_custom_call.1} parent=1 // pred_fallthru
      _
    %852 = vsyncpa [#allocation3], 1
    %853 = vsyncpa [#allocation4], 1

</llo_original>
